<compile_context>
chip_gen: v6e
topology: v6e:2x2x1
jax: 0.10.0
libtpu: 0.0.40
codegen_flags: <defaults>
</compile_context>

<pallas_src>
import jax
import jax.numpy as jnp
from jax.experimental import pallas as pl
from jax.experimental.pallas import tpu as pltpu


def _extractor_kernel(xa_ref,    # (NB, T*F)  bf16 VMEM block: rows n0..n0+NB of x
                      xb_ref,    # (NB, T*F)  bf16 VMEM block: rows of x[idx]
                      a_ref,     # (T*F, T*F) bf16 resident: kron(W.T, I_F)
                      b2_ref,    # (1, T*F)   f32 resident: bias repeated per feature
                      lam_ref,   # (N, 1)     f32 resident: mixup lambda per batch row
                      out_ref):  # (NB, T*F)  f32 output block
    nb = xa_ref.shape[0]
    n0 = pl.multiple_of(pl.program_id(0) * nb, nb)

    a = a_ref[...]
    b2 = b2_ref[...]
    lam = lam_ref[pl.ds(n0, nb), :]          # (nb, 1), broadcasts over lanes

    # seq-linear + ReLU for the primary rows.  Accumulate-form blend keeps only
    # one (nb, T*F) f32 intermediate live at a time.
    y_a = jnp.maximum(
        jnp.dot(xa_ref[...], a, preferred_element_type=jnp.float32) + b2, 0.0)
    out_ref[...] = lam * y_a

    # Same transform for the gathered mixup partners, accumulated into out.
    y_b = jnp.maximum(
        jnp.dot(xb_ref[...], a, preferred_element_type=jnp.float32) + b2, 0.0)
    out_ref[...] += (1.0 - lam) * y_b


def build_seq_linear_params(w, b, feat_dim, compute_dtype=jnp.bfloat16):
    """Precompute A = kron(W.T, I_F) and the repeated bias row.

    Hoisted out of the per-call path: depends only on the Linear weights.
    A[k*F+g, t*F+f] = W[t,k] * delta(g,f) so x2 @ A realizes the seq-linear.
    """
    T = w.shape[0]
    F = feat_dim
    a_mat = jnp.kron(w.astype(jnp.float32).T,
                     jnp.eye(F, dtype=jnp.float32)).astype(compute_dtype)   # (TF, TF)
    b2 = jnp.repeat(b.astype(jnp.float32), F).reshape(1, T * F)             # b2[t*F+f]=b[t]
    return a_mat, b2


def _pick_batch_block(n, target=256):
    """Largest multiple-of-8 divisor of n that is <= target, preferring a grid
    of >= 2 steps (so the 'parallel' batch axis spans both TensorCores on v7x).
    Falls back to the whole batch when n is not a multiple of 8 (a block equal
    to the full dim is always allowed)."""
    if n % 8 != 0:
        return n
    divisors = [d for d in range(8, n + 1, 8) if n % d == 0]
    multi_step = [d for d in divisors if d <= target and n // d >= 2]
    if multi_step:
        return max(multi_step)
    small = [d for d in divisors if d <= target]
    return max(small) if small else n


def extractor_forward(x, a_mat, b2, lamb, idx, *, nb=None,
                      compute_dtype=jnp.bfloat16):
    """x: (N,T,F); a_mat: (T*F,T*F); b2: (1,T*F); lamb: (N,1,1); idx: (N,) int."""
    N, T, F = x.shape
    TF = T * F
    assert a_mat.shape == (TF, TF) and b2.shape == (1, TF)

    if nb is None:
        nb = _pick_batch_block(N)
    assert N % nb == 0 and (nb % 8 == 0 or nb == N)

    x2 = x.reshape(N, TF).astype(compute_dtype)     # free reshape; bf16 for MXU/HBM
    xb2 = x2[idx]                                   # wrapper-side XLA gather of mixup partners
    lamb2 = lamb.reshape(N, 1).astype(jnp.float32)
    b2 = b2.astype(jnp.float32)
    a_mat = a_mat.astype(compute_dtype)

    # VMEM budget from actual buffer sizes (double-buffered pipelined blocks,
    # resident weight / bias / lambda), with headroom; never below 32 MiB.
    in_item = jnp.dtype(compute_dtype).itemsize
    vmem_bytes = (
        2 * (2 * nb * TF * in_item)              # xa, xb pipelined blocks
        + 2 * nb * TF * 4                        # out pipelined block (f32)
        + 2 * TF * TF * in_item                  # A (conservatively 2 buffers)
        + 2 * 8 * TF * 4                         # bias row (sublane-padded)
        + 2 * ((N + 7) // 8) * 8 * 128 * 4       # lambda (lane-padded to 128)
    )
    vmem_limit = int(min(max(2 * vmem_bytes + (8 << 20), 32 << 20), 128 << 20))

    grid_spec = pltpu.PrefetchScalarGridSpec(
        num_scalar_prefetch=0,
        grid=(N // nb,),
        in_specs=[
            pl.BlockSpec((nb, TF), lambda i: (i, 0)),    # x_a rows (pipelined)
            pl.BlockSpec((nb, TF), lambda i: (i, 0)),    # x_b = x[idx] rows (pipelined)
            pl.BlockSpec((TF, TF), lambda i: (0, 0)),    # kron weight (resident)
            pl.BlockSpec((1, TF), lambda i: (0, 0)),     # bias row (resident)
            pl.BlockSpec((N, 1), lambda i: (0, 0)),      # lambda, whole batch resident
        ],
        out_specs=pl.BlockSpec((nb, TF), lambda i: (i, 0)),
    )

    mix2 = pl.pallas_call(
        _extractor_kernel,
        out_shape=jax.ShapeDtypeStruct((N, TF), jnp.float32),
        grid_spec=grid_spec,
        compiler_params=pltpu.CompilerParams(
            dimension_semantics=("parallel",),      # batch blocks are independent
            vmem_limit_bytes=vmem_limit),
    )(x2, xb2, a_mat, b2, lamb2)

    return mix2.reshape(N, T, F), lamb, idx


def reference_forward(x, w, b, lamb, idx):
    # Pure-JAX (f32) mirror of the PyTorch code path.
    xp = jnp.transpose(x, (0, 2, 1))            # (N, F, T)
    y = jnp.maximum(xp @ w.T + b, 0.0)          # Linear(seq_len) + ReLU
    y = jnp.transpose(y, (0, 2, 1))             # (N, T, F)
    return lamb * y + (1.0 - lamb) * y[idx]


if __name__ == "__main__":
    # small shapes implied by the module: batch N, seq_len T, feature F
    N, T, F = 64, 8, 32

    key = jax.random.PRNGKey(0)
    k_x, k_w, k_b, k_lam, k_perm = jax.random.split(key, 5)

    x = jax.random.normal(k_x, (N, T, F), dtype=jnp.float32)

    # nn.Linear(seq_len, seq_len) parameters (deterministic synthetic init)
    bound = 1.0 / jnp.sqrt(T)
    w = jax.random.uniform(k_w, (T, T), minval=-bound, maxval=bound, dtype=jnp.float32)
    b = jax.random.uniform(k_b, (T,),   minval=-bound, maxval=bound, dtype=jnp.float32)

    # latent_mixup RNG glue: Beta(20, 0.5) clipped to [0.5, 1.0], random permutation
    lamb = jnp.clip(jax.random.beta(k_lam, 20.0, 0.5, (N, 1, 1)), 0.5, 1.0).astype(jnp.float32)
    idx = jax.random.permutation(k_perm, N).astype(jnp.int32)

    a_mat, b2 = build_seq_linear_params(w, b, F)          # hoisted weight prep
    mix, lamb_out, idx_out = extractor_forward(x, a_mat, b2, lamb, idx)
    jax.block_until_ready(mix)

    ref = reference_forward(x, w, b, lamb, idx)
    # bf16 MXU operands (f32 accumulation): tolerance looser than the pure-f32 path.
    assert jnp.allclose(mix, ref, atol=5e-2, rtol=5e-2), "mismatch vs reference"

    print("KERNEL_OK")
</pallas_src>

<mosaic_0001>
module attributes {stable_mosaic.version = 11 : i64} {
  func.func @_extractor_kernel(%arg0: i32, %arg1: memref<32x256xbf16, #tpu.memory_space<vmem>>, %arg2: memref<32x256xbf16, #tpu.memory_space<vmem>>, %arg3: memref<256x256xbf16, #tpu.memory_space<vmem>>, %arg4: memref<1x256xf32, #tpu.memory_space<vmem>>, %arg5: memref<64x1xf32, #tpu.memory_space<vmem>>, %arg6: memref<32x256xf32, #tpu.memory_space<vmem>>) attributes {dimension_semantics = [#tpu.dimension_semantics<parallel>], iteration_bounds = array<i64: 2>, scalar_prefetch = 0 : i64, scratch_operands = 0 : i64, tpu.core_type = #tpu.core_type<tc>, window_params = [{transform_indices = @transform_0, window_bounds = array<i64: 32, 256>}, {transform_indices = @transform_1, window_bounds = array<i64: 32, 256>}, {pipeline_mode = #tpu.pipeline_mode<synchronous>, transform_indices = @transform_2, window_bounds = array<i64: 256, 256>}, {pipeline_mode = #tpu.pipeline_mode<synchronous>, transform_indices = @transform_3, window_bounds = array<i64: 1, 256>}, {pipeline_mode = #tpu.pipeline_mode<synchronous>, transform_indices = @transform_4, window_bounds = array<i64: 64, 1>}, {transform_indices = @transform_5, window_bounds = array<i64: 32, 256>}]} {
    %c32_i32 = arith.constant 32 : i32
    %0 = arith.muli %arg0, %c32_i32 : i32
    %1 = tpu.assume_multiple %0, 32 : i32
    %c0 = arith.constant 0 : index
    %c0_0 = arith.constant 0 : index
    %2 = vector.load %arg3[%c0, %c0_0] : memref<256x256xbf16, #tpu.memory_space<vmem>>, vector<256x256xbf16>
    %c0_1 = arith.constant 0 : index
    %c0_2 = arith.constant 0 : index
    %3 = vector.load %arg4[%c0_1, %c0_2] : memref<1x256xf32, #tpu.memory_space<vmem>>, vector<1x256xf32>
    %4 = arith.index_cast %1 : i32 to index
    %c0_3 = arith.constant 0 : index
    %5 = vector.load %arg5[%4, %c0_3] : memref<64x1xf32, #tpu.memory_space<vmem>>, vector<32x1xf32>
    %c0_4 = arith.constant 0 : index
    %c0_5 = arith.constant 0 : index
    %6 = vector.load %arg1[%c0_4, %c0_5] : memref<32x256xbf16, #tpu.memory_space<vmem>>, vector<32x256xbf16>
    %cst = arith.constant dense<0.000000e+00> : vector<32x256xf32>
    %7 = tpu.matmul %6, %2, %cst {dimension_numbers = #tpu.dot_dimension_numbers<[1], [0], [0], [1], [0, 0, 1, 1], [], []>} : vector<32x256xbf16>, vector<256x256xbf16>, vector<32x256xf32> -> vector<32x256xf32>
    %8 = vector.broadcast %3 : vector<1x256xf32> to vector<32x256xf32>
    %9 = arith.addf %7, %8 : vector<32x256xf32>
    %cst_6 = arith.constant 0.000000e+00 : f32
    %10 = vector.broadcast %cst_6 : f32 to vector<32x256xf32>
    %11 = arith.maximumf %9, %10 : vector<32x256xf32>
    %12 = vector.broadcast %5 : vector<32x1xf32> to vector<32x256xf32>
    %13 = arith.mulf %12, %11 : vector<32x256xf32>
    %c0_7 = arith.constant 0 : index
    %c0_8 = arith.constant 0 : index
    %14 = vector.load %arg6[%c0_7, %c0_8] : memref<32x256xf32, #tpu.memory_space<vmem>>, vector<32x256xf32>
    tpu.vector_store %arg6[%c0_7, %c0_8], %13 {strides = array<i32>} : memref<32x256xf32, #tpu.memory_space<vmem>>, vector<32x256xf32>,
    %c0_9 = arith.constant 0 : index
    %c0_10 = arith.constant 0 : index
    %15 = vector.load %arg2[%c0_9, %c0_10] : memref<32x256xbf16, #tpu.memory_space<vmem>>, vector<32x256xbf16>
    %cst_11 = arith.constant dense<0.000000e+00> : vector<32x256xf32>
    %16 = tpu.matmul %15, %2, %cst_11 {dimension_numbers = #tpu.dot_dimension_numbers<[1], [0], [0], [1], [0, 0, 1, 1], [], []>} : vector<32x256xbf16>, vector<256x256xbf16>, vector<32x256xf32> -> vector<32x256xf32>
    %17 = vector.broadcast %3 : vector<1x256xf32> to vector<32x256xf32>
    %18 = arith.addf %16, %17 : vector<32x256xf32>
    %cst_12 = arith.constant 0.000000e+00 : f32
    %19 = vector.broadcast %cst_12 : f32 to vector<32x256xf32>
    %20 = arith.maximumf %18, %19 : vector<32x256xf32>
    %c0_13 = arith.constant 0 : index
    %c0_14 = arith.constant 0 : index
    %21 = vector.load %arg6[%c0_13, %c0_14] : memref<32x256xf32, #tpu.memory_space<vmem>>, vector<32x256xf32>
    %cst_15 = arith.constant 1.000000e+00 : f32
    %22 = vector.broadcast %cst_15 : f32 to vector<32x1xf32>
    %23 = arith.subf %22, %5 : vector<32x1xf32>
    %24 = vector.broadcast %23 : vector<32x1xf32> to vector<32x256xf32>
    %25 = arith.mulf %24, %20 : vector<32x256xf32>
    %26 = arith.addf %21, %25 : vector<32x256xf32>
    %c0_16 = arith.constant 0 : index
    %c0_17 = arith.constant 0 : index
    %27 = vector.load %arg6[%c0_16, %c0_17] : memref<32x256xf32, #tpu.memory_space<vmem>>, vector<32x256xf32>
    tpu.vector_store %arg6[%c0_16, %c0_17], %26 {strides = array<i32>} : memref<32x256xf32, #tpu.memory_space<vmem>>, vector<32x256xf32>,
    return
  }
  func.func @transform_0(%arg0: i32) -> (i32, i32) {
    %c0_i32 = arith.constant 0 : i32
    %c0_i32_0 = arith.constant 0 : i32
    return %arg0, %c0_i32 : i32, i32
  }
  func.func @transform_1(%arg0: i32) -> (i32, i32) {
    %c0_i32 = arith.constant 0 : i32
    %c0_i32_0 = arith.constant 0 : i32
    return %arg0, %c0_i32 : i32, i32
  }
  func.func @transform_2(%arg0: i32) -> (i32, i32) {
    %c0_i32 = arith.constant 0 : i32
    %c0_i32_0 = arith.constant 0 : i32
    %c0_i32_1 = arith.constant 0 : i32
    return %c0_i32, %c0_i32_0 : i32, i32
  }
  func.func @transform_3(%arg0: i32) -> (i32, i32) {
    %c0_i32 = arith.constant 0 : i32
    %c0_i32_0 = arith.constant 0 : i32
    %c0_i32_1 = arith.constant 0 : i32
    return %c0_i32, %c0_i32_0 : i32, i32
  }
  func.func @transform_4(%arg0: i32) -> (i32, i32) {
    %c0_i32 = arith.constant 0 : i32
    %c0_i32_0 = arith.constant 0 : i32
    %c0_i32_1 = arith.constant 0 : i32
    return %c0_i32, %c0_i32_0 : i32, i32
  }
  func.func @transform_5(%arg0: i32) -> (i32, i32) {
    %c0_i32 = arith.constant 0 : i32
    %c0_i32_0 = arith.constant 0 : i32
    return %arg0, %c0_i32 : i32, i32
  }
}

</mosaic_0001>

<llo_original>
// kernel: tpu_custom_call.1
$region0: #{tpu_custom_call.1}
  #allocation0 [shape = 'u32[]', space=smem, size = 0x4, offset = 0x4, fixed_abs, tag = 'smem constant byte address 0x4 - core index']
  #allocation1 [shape = 'u32[144,128]{1,0:T(1,128)}', space=vmem, size = 0x12000, scoped, tag = 'internal scratch']
  %s0 = inlined_call_operand.vmem [shape: bf16[64,256], index: 0, kind: input, shape index: {}]
  %s1 = inlined_call_operand.hbm [shape: bf16[64,256], index: 1, kind: input, shape index: {}]
  %s2 = inlined_call_operand.hbm [shape: bf16[256,256], index: 2, kind: input, shape index: {}]
  %s3 = inlined_call_operand.vmem [shape: f32[1,256], index: 3, kind: input, shape index: {}]
  %s4 = inlined_call_operand.vmem [shape: f32[64,1], index: 4, kind: input, shape index: {}]
  %s5 = inlined_call_operand.hbm [shape: f32[64,256], index: 5, kind: output, shape index: {}]
  %s6 = sld [smem:[#allocation0]]
  $region61: #{tpu_custom_call.1} parent=0
    _
  %s8 = ssub.s32 1, %s6
  %s9 = scalar_select 0, %s8, %s6
  $region1: #{tpu_custom_call.1} parent=0
    #allocation2 [shape = 'u8[32768]{0}', space=vmem, size = 0x8000, scoped, tag = 'input window, operand 1']
    #allocation3 [shape = 's32[2]{0}', space=sflag, size = 0x8, scoped, tag = 'scoped memory for tpu_custom_call.1']
    #allocation4 [shape = 's32[2]{0}', space=sflag, size = 0x8, scoped, tag = 'scoped memory for tpu_custom_call.1']
    #allocation5 [shape = 'u8[131072]{0}', space=vmem, size = 0x20000, scoped, tag = 'input window, operand 2, single buffered']
    #allocation6 [shape = 's32[1]{0}', space=sflag, size = 0x4, scoped, tag = 'scoped memory for tpu_custom_call.1']
    #allocation7 [shape = 'u8[65536]{0}', space=vmem, size = 0x10000, scoped, tag = 'output window, operand 0']
    %10 = vsyncpa [#allocation3], 0
    %s11 = scalar_lea.sflag [#allocation3], 1
    %12 = vsyncpa %s11, 0
    %13 = vsyncpa [#allocation6], 0
    %14 = vsyncpa [#allocation4], 0
    %s15 = scalar_lea.sflag [#allocation4], 1
    %16 = vsyncpa %s15, 0
    loop: start=0, step=1, limit=4
    $region2: #{tpu_custom_call.1} parent=1 // loop_pre_header
      _
    $region3: #{tpu_custom_call.1} parent=1 // loop_header
      %s18 = sphi 0, %s22
      %p19 = scmp.ge.s32.totalorder %s18, 4
      %s28 = sphi 0, %s30
      %s31 = sphi 0, %s28
      %s32 = sphi 0, %s31
      %s48 = sphi 0, %s32
      %s54 = sphi 0, %s56
      %s57 = sphi 0, %s54
      %s58 = sphi 0, %s57
      %s74 = sphi 0, %s58
      %s78 = sphi 0, %s78
      %s80 = sphi 0, %s78
      %s81 = sphi 0, %s80
      %s95 = sphi 0, %s81
      %s99 = sphi 0, %s99
      %s101 = sphi 0, %s99
      %s102 = sphi 0, %s101
      %s116 = sphi 0, %s102
      %s120 = sphi 0, %s120
      %s122 = sphi 0, %s120
      %s123 = sphi 0, %s122
      %s137 = sphi 0, %s123
      %s143 = sphi 0, %s145
      %s146 = sphi 0, %s143
      %s147 = sphi 0, %s146
      %s163 = sphi 0, %s147
    $region4: #{tpu_custom_call.1} parent=1 // loop_header_branch
      %21 = sbr.rel (%p19) target = $region8
    $region5: #{tpu_custom_call.1} parent=1 // loop_body
      %s23 = ssub.s32 %s18, 1
      %s24 = ssub.s32 %s18, 2
      %s25 = sadd.s32 %s18, 1
      %s26 = ssub.s32 %s18, %s25
      %p27 = scmp.eq.s32.totalorder %s26, 0
      %s29 = sadd.s32 %s28, 1
      %s30 = scalar_select %p27, %s28, %s29
      %p33 = pneg %p27
      %p34 = scmp.eq.s32.totalorder %s18, 1
      %p35 = por %p33, %p34
      %p36 = scmp.ne.s32.totalorder %s28, %s31
      %p37 = scmp.eq.s32.totalorder %s18, 0
      %p38 = por %p36, %p37
      %p39 = scmp.ne.s32.totalorder %s28, %s31
      %p40 = scmp.eq.s32.totalorder %s23, 1
      %p41 = por %p39, %p40
      %p42 = scmp.ne.s32.totalorder %s31, %s32
      %p43 = scmp.eq.s32.totalorder %s23, 0
      %p44 = por %p42, %p43
      %p45 = scmp.ne.s32.totalorder %s31, %s32
      %p46 = scmp.eq.s32.totalorder %s24, 1
      %p47 = por %p45, %p46
      %p49 = scmp.ne.s32.totalorder %s32, %s48
      %p50 = scmp.eq.s32.totalorder %s24, 0
      %p51 = por %p49, %p50
      %s52 = ssub.s32 %s18, %s25
      %p53 = scmp.eq.s32.totalorder %s52, 0
      %s55 = sadd.s32 %s54, 1
      %s56 = scalar_select %p53, %s54, %s55
      %p59 = pneg %p53
      %p60 = scmp.eq.s32.totalorder %s18, 1
      %p61 = por %p59, %p60
      %p62 = scmp.ne.s32.totalorder %s54, %s57
      %p63 = scmp.eq.s32.totalorder %s18, 0
      %p64 = por %p62, %p63
      %p65 = scmp.ne.s32.totalorder %s54, %s57
      %p66 = scmp.eq.s32.totalorder %s23, 1
      %p67 = por %p65, %p66
      %p68 = scmp.ne.s32.totalorder %s57, %s58
      %p69 = scmp.eq.s32.totalorder %s23, 0
      %p70 = por %p68, %p69
      %p71 = scmp.ne.s32.totalorder %s57, %s58
      %p72 = scmp.eq.s32.totalorder %s24, 1
      %p73 = por %p71, %p72
      %p75 = scmp.ne.s32.totalorder %s58, %s74
      %p76 = scmp.eq.s32.totalorder %s24, 0
      %p77 = por %p75, %p76
      %s79 = sadd.s32 %s78, 1
      %p82 = scmp.eq.s32.totalorder %s18, 1
      %p83 = scmp.ne.s32.totalorder %s78, %s80
      %p84 = scmp.eq.s32.totalorder %s18, 0
      %p85 = por %p83, %p84
      %p86 = scmp.ne.s32.totalorder %s78, %s80
      %p87 = scmp.eq.s32.totalorder %s23, 1
      %p88 = por %p86, %p87
      %p89 = scmp.ne.s32.totalorder %s80, %s81
      %p90 = scmp.eq.s32.totalorder %s23, 0
      %p91 = por %p89, %p90
      %p92 = scmp.ne.s32.totalorder %s80, %s81
      %p93 = scmp.eq.s32.totalorder %s24, 1
      %p94 = por %p92, %p93
      %p96 = scmp.ne.s32.totalorder %s81, %s95
      %p97 = scmp.eq.s32.totalorder %s24, 0
      %p98 = por %p96, %p97
      %s100 = sadd.s32 %s99, 1
      %p103 = scmp.eq.s32.totalorder %s18, 1
      %p104 = scmp.ne.s32.totalorder %s99, %s101
      %p105 = scmp.eq.s32.totalorder %s18, 0
      %p106 = por %p104, %p105
      %p107 = scmp.ne.s32.totalorder %s99, %s101
      %p108 = scmp.eq.s32.totalorder %s23, 1
      %p109 = por %p107, %p108
      %p110 = scmp.ne.s32.totalorder %s101, %s102
      %p111 = scmp.eq.s32.totalorder %s23, 0
      %p112 = por %p110, %p111
      %p113 = scmp.ne.s32.totalorder %s101, %s102
      %p114 = scmp.eq.s32.totalorder %s24, 1
      %p115 = por %p113, %p114
      %p117 = scmp.ne.s32.totalorder %s102, %s116
      %p118 = scmp.eq.s32.totalorder %s24, 0
      %p119 = por %p117, %p118
      %s121 = sadd.s32 %s120, 1
      %p124 = scmp.eq.s32.totalorder %s18, 1
      %p125 = scmp.ne.s32.totalorder %s120, %s122
      %p126 = scmp.eq.s32.totalorder %s18, 0
      %p127 = por %p125, %p126
      %p128 = scmp.ne.s32.totalorder %s120, %s122
      %p129 = scmp.eq.s32.totalorder %s23, 1
      %p130 = por %p128, %p129
      %p131 = scmp.ne.s32.totalorder %s122, %s123
      %p132 = scmp.eq.s32.totalorder %s23, 0
      %p133 = por %p131, %p132
      %p134 = scmp.ne.s32.totalorder %s122, %s123
      %p135 = scmp.eq.s32.totalorder %s24, 1
      %p136 = por %p134, %p135
      %p138 = scmp.ne.s32.totalorder %s123, %s137
      %p139 = scmp.eq.s32.totalorder %s24, 0
      %p140 = por %p138, %p139
      %s141 = ssub.s32 %s18, %s25
      %p142 = scmp.eq.s32.totalorder %s141, 0
      %s144 = sadd.s32 %s143, 1
      %s145 = scalar_select %p142, %s143, %s144
      %p148 = pneg %p142
      %p149 = scmp.eq.s32.totalorder %s18, 1
      %p150 = por %p148, %p149
      %p151 = scmp.ne.s32.totalorder %s143, %s146
      %p152 = scmp.eq.s32.totalorder %s18, 0
      %p153 = por %p151, %p152
      %p154 = scmp.ne.s32.totalorder %s143, %s146
      %p155 = scmp.eq.s32.totalorder %s23, 1
      %p156 = por %p154, %p155
      %p157 = scmp.ne.s32.totalorder %s146, %s147
      %p158 = scmp.eq.s32.totalorder %s23, 0
      %p159 = por %p157, %p158
      %p160 = scmp.ne.s32.totalorder %s146, %s147
      %p161 = scmp.eq.s32.totalorder %s24, 1
      %p162 = por %p160, %p161
      %p164 = scmp.ne.s32.totalorder %s147, %s163
      %p165 = scmp.eq.s32.totalorder %s24, 0
      %p166 = por %p164, %p165
      %p167 = scmp.le.s32.totalorder 1, %s18
      %p168 = scmp.lt.s32.totalorder %s18, 3
      %p169 = pnand %p167, %p168
      %p170 = pneg %p169
      // Predicated region
      $region9: #{tpu_custom_call.1} parent=5 // pred_check
        _
      $region10: #{tpu_custom_call.1} parent=5 // pred_check_branch
        %172 = sbr.rel (%p169) target = $region12
      $region11: #{tpu_custom_call.1} parent=5 // pred_region
        %s173 = ssub.s32 %s18, 1
        // Predicated region
        $region13: #{tpu_custom_call.1} parent=11 // pred_check
          %p174 = pneg %p91
        $region14: #{tpu_custom_call.1} parent=11 // pred_check_branch
          %176 = sbr.rel (%p174) target = $region16
        $region15: #{tpu_custom_call.1} parent=11 // pred_region
          %s178 = ssub.s32 4096, 4096
          %179 = vsyncadd [#allocation6], %s178
          %s180 = sshll.u32 [#allocation5], 4
          %s181 = int_to_ptr.vmem [resolvable:$true] %s180
          %186 = dma.hbm_to_vmem [thread:$0]  %s2, 4096, %s181, [#allocation6], 128, 128, 8
        $region16: #{tpu_custom_call.1} parent=11 // pred_fallthru
          _
        // Predicated region
        $region17: #{tpu_custom_call.1} parent=11 // pred_check
          %p187 = pneg %p112
        $region18: #{tpu_custom_call.1} parent=11 // pred_check_branch
          %189 = sbr.rel (%p187) target = $region20
        $region19: #{tpu_custom_call.1} parent=11 // pred_region
          _
        $region20: #{tpu_custom_call.1} parent=11 // pred_fallthru
          _
        // Predicated region
        $region21: #{tpu_custom_call.1} parent=11 // pred_check
          %p190 = pneg %p133
        $region22: #{tpu_custom_call.1} parent=11 // pred_check_branch
          %192 = sbr.rel (%p190) target = $region24
        $region23: #{tpu_custom_call.1} parent=11 // pred_region
          _
        $region24: #{tpu_custom_call.1} parent=11 // pred_fallthru
          _
      $region12: #{tpu_custom_call.1} parent=5 // pred_fallthru
        _
      %p193 = scmp.lt.s32.totalorder %s18, 2
      // Predicated region
      $region25: #{tpu_custom_call.1} parent=5 // pred_check
        %p194 = pneg %p193
      $region26: #{tpu_custom_call.1} parent=5 // pred_check_branch
        %196 = sbr.rel (%p194) target = $region28
      $region27: #{tpu_custom_call.1} parent=5 // pred_region
        // Predicated region
        $region29: #{tpu_custom_call.1} parent=27 // pred_check
          %p197 = pneg %p38
        $region30: #{tpu_custom_call.1} parent=27 // pred_check_branch
          %199 = sbr.rel (%p197) target = $region32
        $region31: #{tpu_custom_call.1} parent=27 // pred_region
          %s200 = smul.u32 4, %s18
          %p201 = scmp.lt.s32.totalorder %s200, 7
          %s202 = scalar_select %p201, %s200, 7
          %s203 = smul.addr %s202, 2
          %s204 = smul.addr %s203, 4
          %s205 = scalar_lea.vmem %s0, %s204
          %s206 = smul.u32 4, %s18
        $region32: #{tpu_custom_call.1} parent=27 // pred_fallthru
          _
        // Predicated region
        $region33: #{tpu_custom_call.1} parent=27 // pred_check
          %p207 = pneg %p64
        $region34: #{tpu_custom_call.1} parent=27 // pred_check_branch
          %209 = sbr.rel (%p207) target = $region36
        $region35: #{tpu_custom_call.1} parent=27 // pred_region
          %s210 = sand.u32 %s54, 1
          %s211 = scalar_lea.sflag [#allocation3], %s210
          %s212 = sand.u32 %s54, 1
          %s213 = smul.addr %s212, 32
          %s214 = scalar_lea.vmem [#allocation2], %s213
          %s215 = smul.u32 4, %s18
          %s217 = ssub.s32 512, 512
          %218 = vsyncadd %s211, %s217
          %s219 = smul.addr %s215, 2
          %s220 = smul.addr %s219, 64
          %s221 = scalar_lea.hbm %s1, %s220
          %s222 = sshll.u32 %s214, 4
          %s223 = int_to_ptr.vmem [resolvable:$true] %s222
          %228 = dma.hbm_to_vmem [thread:$0]  %s221, 512, %s223, %s211, 128, 128, 8
        $region36: #{tpu_custom_call.1} parent=27 // pred_fallthru
          _
      $region28: #{tpu_custom_call.1} parent=5 // pred_fallthru
        _
      %p229 = scmp.le.s32.totalorder 1, %s18
      %p230 = scmp.lt.s32.totalorder %s18, 3
      %p231 = pnand %p229, %p230
      %p232 = pneg %p231
      // Predicated region
      $region37: #{tpu_custom_call.1} parent=5 // pred_check
        _
      $region38: #{tpu_custom_call.1} parent=5 // pred_check_branch
        %234 = sbr.rel (%p231) target = $region40
      $region39: #{tpu_custom_call.1} parent=5 // pred_region
        %s235 = ssub.s32 %s18, 1
        %s236 = sand.u32 %s57, 1
        %s237 = scalar_lea.sflag [#allocation3], %s236
        %s238 = sand.u32 %s57, 1
        %s239 = smul.addr %s238, 32
        %s240 = scalar_lea.vmem [#allocation2], %s239
        // Predicated region
        $region41: #{tpu_custom_call.1} parent=39 // pred_check
          %p241 = pneg %p70
        $region42: #{tpu_custom_call.1} parent=39 // pred_check_branch
          %243 = sbr.rel (%p241) target = $region44
        $region43: #{tpu_custom_call.1} parent=39 // pred_region
          %244 = dma.done %s237, 512
        $region44: #{tpu_custom_call.1} parent=39 // pred_fallthru
          _
        // Predicated region
        $region45: #{tpu_custom_call.1} parent=39 // pred_check
          %p245 = pneg %p91
        $region46: #{tpu_custom_call.1} parent=39 // pred_check_branch
          %247 = sbr.rel (%p245) target = $region48
        $region47: #{tpu_custom_call.1} parent=39 // pred_region
          %248 = dma.done [#allocation6], 4096
        $region48: #{tpu_custom_call.1} parent=39 // pred_fallthru
          _
        %s249 = smul.u32 4, %s23
        %p250 = scmp.lt.s32.totalorder %s249, 7
        %s251 = scalar_select %p250, %s249, 7
        %s252 = smul.addr %s251, 2
        %s253 = smul.addr %s252, 4
        %s254 = scalar_lea.vmem %s0, %s253
        %p255 = pneg %p44
        %p256 = pneg %p41
        %s257 = sand.u32 %s57, 1
        %s258 = scalar_lea.sflag [#allocation3], %s257
        %s259 = sand.u32 %s57, 1
        %s260 = smul.addr %s259, 32
        %s261 = scalar_lea.vmem [#allocation2], %s260
        %p262 = pneg %p70
        %p263 = pneg %p67
        %p264 = pneg %p91
        %p265 = pneg %p88
        %p266 = pneg %p112
        %p267 = pneg %p109
        %p268 = pneg %p133
        %p269 = pneg %p130
        %p270 = pneg %p159
        %p271 = pneg %p156
        %s272 = sand.u32 %s146, 1
        %s273 = scalar_lea.sflag [#allocation4], %s272
        %s274 = sand.u32 %s146, 1
        %s275 = smul.addr %s274, 64
        %s276 = scalar_lea.vmem [#allocation7], %s275
        %s277 = smul.u32 4, %s23
        %p278 = scmp.lt.s32.totalorder %s277, 7
        %s279 = scalar_select %p278, %s277, 7
        %s280 = smul.addr %s279, 2
        %s281 = smul.addr %s280, 4
        %s282 = scalar_lea.vmem %s0, %s281
        %s283 = smul.u32 4, %s23
        %s284 = smul.u32 4, %s23
        %s285 = smul.u32 4, %s23
        %s286 = smul.u32 %s23, 32
        %v287 = vld [vmem:[#allocation5] sm:$0xff]
        %v288 = vld [vmem:[#allocation5 + $0x8] sm:$0xff]
        %v289 = vld [vmem:[#allocation5 + $0x10] sm:$0xff]
        %v290 = vld [vmem:[#allocation5 + $0x18] sm:$0xff]
        %v291 = vld [vmem:[#allocation5 + $0x20] sm:$0xff]
        %v292 = vld [vmem:[#allocation5 + $0x28] sm:$0xff]
        %v293 = vld [vmem:[#allocation5 + $0x30] sm:$0xff]
        %v294 = vld [vmem:[#allocation5 + $0x38] sm:$0xff]
        %v295 = vld [vmem:[#allocation5 + $0x40] sm:$0xff]
        %v296 = vld [vmem:[#allocation5 + $0x48] sm:$0xff]
        %v297 = vld [vmem:[#allocation5 + $0x50] sm:$0xff]
        %v298 = vld [vmem:[#allocation5 + $0x58] sm:$0xff]
        %v299 = vld [vmem:[#allocation5 + $0x60] sm:$0xff]
        %v300 = vld [vmem:[#allocation5 + $0x68] sm:$0xff]
        %v301 = vld [vmem:[#allocation5 + $0x70] sm:$0xff]
        %v302 = vld [vmem:[#allocation5 + $0x78] sm:$0xff]
        %v303 = vld [vmem:[#allocation5 + $0x80] sm:$0xff]
        %v304 = vld [vmem:[#allocation5 + $0x88] sm:$0xff]
        %v305 = vld [vmem:[#allocation5 + $0x90] sm:$0xff]
        %v306 = vld [vmem:[#allocation5 + $0x98] sm:$0xff]
        %v307 = vld [vmem:[#allocation5 + $0xa0] sm:$0xff]
        %v308 = vld [vmem:[#allocation5 + $0xa8] sm:$0xff]
        %v309 = vld [vmem:[#allocation5 + $0xb0] sm:$0xff]
        %v310 = vld [vmem:[#allocation5 + $0xb8] sm:$0xff]
        %v311 = vld [vmem:[#allocation5 + $0xc0] sm:$0xff]
        %v312 = vld [vmem:[#allocation5 + $0xc8] sm:$0xff]
        %v313 = vld [vmem:[#allocation5 + $0xd0] sm:$0xff]
        %v314 = vld [vmem:[#allocation5 + $0xd8] sm:$0xff]
        %v315 = vld [vmem:[#allocation5 + $0xe0] sm:$0xff]
        %v316 = vld [vmem:[#allocation5 + $0xe8] sm:$0xff]
        %v317 = vld [vmem:[#allocation5 + $0xf0] sm:$0xff]
        %v318 = vld [vmem:[#allocation5 + $0xf8] sm:$0xff]
        %v319 = vld [vmem:[%s3] sm:$0x3]
        %s320 = scalar_lea.vmem %s4, %s286
        %v321 = vld [vmem:[%s320] sm:$0xff]
        %v322 = vld [vmem:[%s320 + $0x8] sm:$0xff]
        %v323 = vld [vmem:[%s320 + $0x10] sm:$0xff]
        %v324 = vld [vmem:[%s320 + $0x18] sm:$0xff]
        %v325 = vld [vmem:[%s282] sm:$0xff]
        %v326 = vld [vmem:[%s282 + $0x8] sm:$0xff]
        %v327 = vld [vmem:[%s282 + $0x10] sm:$0xff]
        %v328 = vld [vmem:[%s282 + $0x18] sm:$0xff]
        %v330 = vlaneseq
        %v331 = vshrl.u32 %v330, 7
        %v332 = vsub.s32 0, %v331
        %v333 = vrot.slane %v319, %v332
        %v334 = vlaneseq
        %v335 = vshrl.u32 %v334, 7
        %v336 = vsub.s32 1, %v335
        %v337 = vrot.slane %v319, %v336
        %v344 = vunpack.c.l.b16 %v325
        %v345 = vunpack.c.h.b16 %v325
        %v346 = vunpack.c.l.b16 %v326
        %v347 = vunpack.c.h.b16 %v326
        %v348 = vunpack.c.l.b16 %v327
        %v349 = vunpack.c.h.b16 %v327
        %v350 = vunpack.c.l.b16 %v328
        %v351 = vunpack.c.h.b16 %v328
        %v352 = vpack.c.b16 %v346, %v344
        %v353 = vpack.c.b16 %v347, %v345
        %v354 = vpack.c.b16 %v350, %v348
        %v355 = vpack.c.b16 %v351, %v349
        %v392 = vunpack.c.l.b16 %v287
        %v393 = vunpack.c.h.b16 %v287
        %v394 = vunpack.c.l.b16 %v288
        %v395 = vunpack.c.h.b16 %v288
        %v396 = vunpack.c.l.b16 %v289
        %v397 = vunpack.c.h.b16 %v289
        %v398 = vunpack.c.l.b16 %v290
        %v399 = vunpack.c.h.b16 %v290
        %v400 = vunpack.c.l.b16 %v291
        %v401 = vunpack.c.h.b16 %v291
        %v402 = vunpack.c.l.b16 %v292
        %v403 = vunpack.c.h.b16 %v292
        %v404 = vunpack.c.l.b16 %v293
        %v405 = vunpack.c.h.b16 %v293
        %v406 = vunpack.c.l.b16 %v294
        %v407 = vunpack.c.h.b16 %v294
        %v408 = vunpack.c.l.b16 %v295
        %v409 = vunpack.c.h.b16 %v295
        %v410 = vunpack.c.l.b16 %v296
        %v411 = vunpack.c.h.b16 %v296
        %v412 = vunpack.c.l.b16 %v297
        %v413 = vunpack.c.h.b16 %v297
        %v414 = vunpack.c.l.b16 %v298
        %v415 = vunpack.c.h.b16 %v298
        %v416 = vunpack.c.l.b16 %v299
        %v417 = vunpack.c.h.b16 %v299
        %v418 = vunpack.c.l.b16 %v300
        %v419 = vunpack.c.h.b16 %v300
        %v420 = vunpack.c.l.b16 %v301
        %v421 = vunpack.c.h.b16 %v301
        %v422 = vunpack.c.l.b16 %v302
        %v423 = vunpack.c.h.b16 %v302
        %v424 = vunpack.c.l.b16 %v303
        %v425 = vunpack.c.h.b16 %v303
        %v426 = vunpack.c.l.b16 %v304
        %v427 = vunpack.c.h.b16 %v304
        %v428 = vunpack.c.l.b16 %v305
        %v429 = vunpack.c.h.b16 %v305
        %v430 = vunpack.c.l.b16 %v306
        %v431 = vunpack.c.h.b16 %v306
        %v432 = vunpack.c.l.b16 %v307
        %v433 = vunpack.c.h.b16 %v307
        %v434 = vunpack.c.l.b16 %v308
        %v435 = vunpack.c.h.b16 %v308
        %v436 = vunpack.c.l.b16 %v309
        %v437 = vunpack.c.h.b16 %v309
        %v438 = vunpack.c.l.b16 %v310
        %v439 = vunpack.c.h.b16 %v310
        %v440 = vunpack.c.l.b16 %v311
        %v441 = vunpack.c.h.b16 %v311
        %v442 = vunpack.c.l.b16 %v312
        %v443 = vunpack.c.h.b16 %v312
        %v444 = vunpack.c.l.b16 %v313
        %v445 = vunpack.c.h.b16 %v313
        %v446 = vunpack.c.l.b16 %v314
        %v447 = vunpack.c.h.b16 %v314
        %v448 = vunpack.c.l.b16 %v315
        %v449 = vunpack.c.h.b16 %v315
        %v450 = vunpack.c.l.b16 %v316
        %v451 = vunpack.c.h.b16 %v316
        %v452 = vunpack.c.l.b16 %v317
        %v453 = vunpack.c.h.b16 %v317
        %v454 = vunpack.c.l.b16 %v318
        %v455 = vunpack.c.h.b16 %v318
        %v456 = vpack.c.b16 %v394, %v392
        %v457 = vpack.c.b16 %v395, %v393
        %v458 = vpack.c.b16 %v398, %v396
        %v459 = vpack.c.b16 %v399, %v397
        %v460 = vpack.c.b16 %v402, %v400
        %v461 = vpack.c.b16 %v403, %v401
        %v462 = vpack.c.b16 %v406, %v404
        %v463 = vpack.c.b16 %v407, %v405
        %v464 = vpack.c.b16 %v410, %v408
        %v465 = vpack.c.b16 %v411, %v409
        %v466 = vpack.c.b16 %v414, %v412
        %v467 = vpack.c.b16 %v415, %v413
        %v468 = vpack.c.b16 %v418, %v416
        %v469 = vpack.c.b16 %v419, %v417
        %v470 = vpack.c.b16 %v422, %v420
        %v471 = vpack.c.b16 %v423, %v421
        %v472 = vpack.c.b16 %v426, %v424
        %v473 = vpack.c.b16 %v427, %v425
        %v474 = vpack.c.b16 %v430, %v428
        %v475 = vpack.c.b16 %v431, %v429
        %v476 = vpack.c.b16 %v434, %v432
        %v477 = vpack.c.b16 %v435, %v433
        %v478 = vpack.c.b16 %v438, %v436
        %v479 = vpack.c.b16 %v439, %v437
        %v480 = vpack.c.b16 %v442, %v440
        %v481 = vpack.c.b16 %v443, %v441
        %v482 = vpack.c.b16 %v446, %v444
        %v483 = vpack.c.b16 %v447, %v445
        %v484 = vpack.c.b16 %v450, %v448
        %v485 = vpack.c.b16 %v451, %v449
        %v486 = vpack.c.b16 %v454, %v452
        %v487 = vpack.c.b16 %v455, %v453
        %520 = vmatprep.subr.bf16.mxu0 %v471
        %521 = vmatpush1.bf16.msra.mxu0 %v470
        %522 = vmatprep.subr.bf16.mxu0 %v469
        %523 = vmatpush1.bf16.msra.mxu0 %v468
        %524 = vmatprep.subr.bf16.mxu0 %v467
        %525 = vmatpush1.bf16.msra.mxu0 %v466
        %526 = vmatprep.subr.bf16.mxu0 %v465
        %527 = vmatpush1.bf16.msra.mxu0 %v464
        %528 = vmatprep.subr.bf16.mxu0 %v463
        %529 = vmatpush1.bf16.msra.mxu0 %v462
        %530 = vmatprep.subr.bf16.mxu0 %v461
        %531 = vmatpush1.bf16.msra.mxu0 %v460
        %532 = vmatprep.subr.bf16.mxu0 %v459
        %533 = vmatpush1.bf16.msra.mxu0 %v458
        %534 = vmatprep.subr.bf16.mxu0 %v457
        %535 = vmatpush1.bf16.msra.mxu0 %v456
        %536 = vmatprep.subr.bf16.mxu0 %v487
        %537 = vmatpush2.bf16.msra.mxu0 %v486
        %538 = vmatprep.subr.bf16.mxu0 %v485
        %539 = vmatpush2.bf16.msra.mxu0 %v484
        %540 = vmatprep.subr.bf16.mxu0 %v483
        %541 = vmatpush2.bf16.msra.mxu0 %v482
        %542 = vmatprep.subr.bf16.mxu0 %v481
        %543 = vmatpush2.bf16.msra.mxu0 %v480
        %544 = vmatprep.subr.bf16.mxu0 %v479
        %545 = vmatpush2.bf16.msra.mxu0 %v478
        %546 = vmatprep.subr.bf16.mxu0 %v477
        %547 = vmatpush2.bf16.msra.mxu0 %v476
        %548 = vmatprep.subr.bf16.mxu0 %v475
        %549 = vmatpush2.bf16.msra.mxu0 %v474
        %550 = vmatprep.subr.bf16.mxu0 %v473
        %551 = vmatpush2.bf16.msra.mxu0 %v472
        %552 = vmatprep.mubr.bf16.mxu0 %v353
        %553 = vmatmul.mubr.bf16.gmra.mxu0 %v352
        %v554 = vpop.f32.mrf.mxu0
        %v555 = vadd.f32 %v333, %v554
        %v556 = vpop.f32.mrf.mxu0
        %v557 = vadd.f32 %v337, %v556
        %v558 = vpop.f32.mrf.mxu0
        %v559 = vadd.f32 %v333, %v558
        %v560 = vpop.f32.mrf.mxu0
        %v561 = vadd.f32 %v337, %v560
        %562 = vmatprep.mubr.bf16.mxu0 %v355
        %563 = vmatmul.mubr.bf16.gmra.mxu0 %v354
        %v564 = vpop.f32.mrf.mxu0
        %v565 = vadd.f32 %v333, %v564
        %v566 = vpop.f32.mrf.mxu0
        %v567 = vadd.f32 %v337, %v566
        %v568 = vpop.f32.mrf.mxu0
        %v569 = vadd.f32 %v333, %v568
        %v570 = vpop.f32.mrf.mxu0
        %v571 = vadd.f32 %v337, %v570
        %572 = vdwg.mxu0
        %v573 = vmax.f32 %v555, 0.0
        %v574 = vmax.f32 %v557, 0.0
        %v575 = vmax.f32 %v559, 0.0
        %v576 = vmax.f32 %v561, 0.0
        %v577 = vmax.f32 %v565, 0.0
        %v578 = vmax.f32 %v567, 0.0
        %v579 = vmax.f32 %v569, 0.0
        %v580 = vmax.f32 %v571, 0.0
        %582 = vset.pattern.permute.xlu0 0
        %583 = vperm.xlu0 %582, %v321
        %v584 = vpop.permute.xlu0 %583
        %587 = vset.pattern.permute.xlu0 0
        %588 = vperm.xlu0 %587, %v322
        %v589 = vpop.permute.xlu0 %588
        %592 = vset.pattern.permute.xlu0 0
        %593 = vperm.xlu0 %592, %v323
        %v594 = vpop.permute.xlu0 %593
        %597 = vset.pattern.permute.xlu0 0
        %598 = vperm.xlu0 %597, %v324
        %v599 = vpop.permute.xlu0 %598
        %v601 = vmul.f32 %v584, %v573
        %v602 = vmul.f32 %v584, %v574
        %v603 = vmul.f32 %v589, %v575
        %v604 = vmul.f32 %v589, %v576
        %v605 = vmul.f32 %v594, %v577
        %v606 = vmul.f32 %v594, %v578
        %v607 = vmul.f32 %v599, %v579
        %v608 = vmul.f32 %v599, %v580
        %609 = vst [vmem:[%s276] sm:$0xff] %v601
        %610 = vst [vmem:[%s276 + $0x8] sm:$0xff] %v602
        %611 = vst [vmem:[%s276 + $0x10] sm:$0xff] %v603
        %612 = vst [vmem:[%s276 + $0x18] sm:$0xff] %v604
        %613 = vst [vmem:[%s276 + $0x20] sm:$0xff] %v605
        %614 = vst [vmem:[%s276 + $0x28] sm:$0xff] %v606
        %615 = vst [vmem:[%s276 + $0x30] sm:$0xff] %v607
        %616 = vst [vmem:[%s276 + $0x38] sm:$0xff] %v608
        %v617 = vld [vmem:[%s240] sm:$0xff]
        %v618 = vld [vmem:[%s240 + $0x8] sm:$0xff]
        %v619 = vld [vmem:[%s240 + $0x10] sm:$0xff]
        %v620 = vld [vmem:[%s240 + $0x18] sm:$0xff]
        %v625 = vunpack.c.l.b16 %v617
        %v626 = vunpack.c.h.b16 %v617
        %v627 = vunpack.c.l.b16 %v618
        %v628 = vunpack.c.h.b16 %v618
        %v629 = vunpack.c.l.b16 %v619
        %v630 = vunpack.c.h.b16 %v619
        %v631 = vunpack.c.l.b16 %v620
        %v632 = vunpack.c.h.b16 %v620
        %v633 = vpack.c.b16 %v627, %v625
        %v634 = vpack.c.b16 %v628, %v626
        %v635 = vpack.c.b16 %v631, %v629
        %v636 = vpack.c.b16 %v632, %v630
        %641 = vmatprep.subr.bf16.mxu0 %v471
        %642 = vmatpush1.bf16.msra.mxu0 %v470
        %643 = vmatprep.subr.bf16.mxu0 %v469
        %644 = vmatpush1.bf16.msra.mxu0 %v468
        %645 = vmatprep.subr.bf16.mxu0 %v467
        %646 = vmatpush1.bf16.msra.mxu0 %v466
        %647 = vmatprep.subr.bf16.mxu0 %v465
        %648 = vmatpush1.bf16.msra.mxu0 %v464
        %649 = vmatprep.subr.bf16.mxu0 %v463
        %650 = vmatpush1.bf16.msra.mxu0 %v462
        %651 = vmatprep.subr.bf16.mxu0 %v461
        %652 = vmatpush1.bf16.msra.mxu0 %v460
        %653 = vmatprep.subr.bf16.mxu0 %v459
        %654 = vmatpush1.bf16.msra.mxu0 %v458
        %655 = vmatprep.subr.bf16.mxu0 %v457
        %656 = vmatpush1.bf16.msra.mxu0 %v456
        %657 = vmatprep.subr.bf16.mxu0 %v487
        %658 = vmatpush2.bf16.msra.mxu0 %v486
        %659 = vmatprep.subr.bf16.mxu0 %v485
        %660 = vmatpush2.bf16.msra.mxu0 %v484
        %661 = vmatprep.subr.bf16.mxu0 %v483
        %662 = vmatpush2.bf16.msra.mxu0 %v482
        %663 = vmatprep.subr.bf16.mxu0 %v481
        %664 = vmatpush2.bf16.msra.mxu0 %v480
        %665 = vmatprep.subr.bf16.mxu0 %v479
        %666 = vmatpush2.bf16.msra.mxu0 %v478
        %667 = vmatprep.subr.bf16.mxu0 %v477
        %668 = vmatpush2.bf16.msra.mxu0 %v476
        %669 = vmatprep.subr.bf16.mxu0 %v475
        %670 = vmatpush2.bf16.msra.mxu0 %v474
        %671 = vmatprep.subr.bf16.mxu0 %v473
        %672 = vmatpush2.bf16.msra.mxu0 %v472
        %673 = vmatprep.mubr.bf16.mxu0 %v634
        %674 = vmatmul.mubr.bf16.gmra.mxu0 %v633
        %v675 = vpop.f32.mrf.mxu0
        %v676 = vadd.f32 %v333, %v675
        %v677 = vpop.f32.mrf.mxu0
        %v678 = vadd.f32 %v337, %v677
        %v679 = vpop.f32.mrf.mxu0
        %v680 = vadd.f32 %v333, %v679
        %v681 = vpop.f32.mrf.mxu0
        %v682 = vadd.f32 %v337, %v681
        %683 = vmatprep.mubr.bf16.mxu0 %v636
        %684 = vmatmul.mubr.bf16.gmra.mxu0 %v635
        %v685 = vpop.f32.mrf.mxu0
        %v686 = vadd.f32 %v333, %v685
        %v687 = vpop.f32.mrf.mxu0
        %v688 = vadd.f32 %v337, %v687
        %v689 = vpop.f32.mrf.mxu0
        %v690 = vadd.f32 %v333, %v689
        %v691 = vpop.f32.mrf.mxu0
        %v692 = vadd.f32 %v337, %v691
        %693 = vdwg.mxu0
        %v694 = vmax.f32 %v676, 0.0
        %v695 = vmax.f32 %v678, 0.0
        %v696 = vmax.f32 %v680, 0.0
        %v697 = vmax.f32 %v682, 0.0
        %v698 = vmax.f32 %v686, 0.0
        %v699 = vmax.f32 %v688, 0.0
        %v700 = vmax.f32 %v690, 0.0
        %v701 = vmax.f32 %v692, 0.0
        %v702 = vld [vmem:[%s276] sm:$0xff]
        %v703 = vld [vmem:[%s276 + $0x8] sm:$0xff]
        %v704 = vld [vmem:[%s276 + $0x10] sm:$0xff]
        %v705 = vld [vmem:[%s276 + $0x18] sm:$0xff]
        %v706 = vld [vmem:[%s276 + $0x20] sm:$0xff]
        %v707 = vld [vmem:[%s276 + $0x28] sm:$0xff]
        %v708 = vld [vmem:[%s276 + $0x30] sm:$0xff]
        %v709 = vld [vmem:[%s276 + $0x38] sm:$0xff]
        %v710 = vsub.f32 1.0, %v321
        %v711 = vsub.f32 1.0, %v322
        %v712 = vsub.f32 1.0, %v323
        %v713 = vsub.f32 1.0, %v324
        %715 = vset.pattern.permute.xlu0 0
        %716 = vperm.xlu0 %715, %v710
        %v717 = vpop.permute.xlu0 %716
        %720 = vset.pattern.permute.xlu0 0
        %721 = vperm.xlu0 %720, %v711
        %v722 = vpop.permute.xlu0 %721
        %725 = vset.pattern.permute.xlu0 0
        %726 = vperm.xlu0 %725, %v712
        %v727 = vpop.permute.xlu0 %726
        %730 = vset.pattern.permute.xlu0 0
        %731 = vperm.xlu0 %730, %v713
        %v732 = vpop.permute.xlu0 %731
        %v734 = vmul.f32 %v717, %v694
        %v735 = vmul.f32 %v717, %v695
        %v736 = vmul.f32 %v722, %v696
        %v737 = vmul.f32 %v722, %v697
        %v738 = vmul.f32 %v727, %v698
        %v739 = vmul.f32 %v727, %v699
        %v740 = vmul.f32 %v732, %v700
        %v741 = vmul.f32 %v732, %v701
        %v742 = vadd.f32 %v702, %v734
        %v743 = vadd.f32 %v703, %v735
        %v744 = vadd.f32 %v704, %v736
        %v745 = vadd.f32 %v705, %v737
        %v746 = vadd.f32 %v706, %v738
        %v747 = vadd.f32 %v707, %v739
        %v748 = vadd.f32 %v708, %v740
        %v749 = vadd.f32 %v709, %v741
        %750 = vst [vmem:[%s276] sm:$0xff] %v742
        %751 = vst [vmem:[%s276 + $0x8] sm:$0xff] %v743
        %752 = vst [vmem:[%s276 + $0x10] sm:$0xff] %v744
        %753 = vst [vmem:[%s276 + $0x18] sm:$0xff] %v745
        %754 = vst [vmem:[%s276 + $0x20] sm:$0xff] %v746
        %755 = vst [vmem:[%s276 + $0x28] sm:$0xff] %v747
        %756 = vst [vmem:[%s276 + $0x30] sm:$0xff] %v748
        %757 = vst [vmem:[%s276 + $0x38] sm:$0xff] %v749
        %s758 = sand.u32 %s146, 1
        %s759 = scalar_lea.sflag [#allocation4], %s758
        %s760 = sand.u32 %s146, 1
        %s761 = smul.addr %s760, 64
        %s762 = scalar_lea.vmem [#allocation7], %s761
        // Predicated region
        $region49: #{tpu_custom_call.1} parent=39 // pred_check
          %p763 = pneg %p156
        $region50: #{tpu_custom_call.1} parent=39 // pred_check_branch
          %765 = sbr.rel (%p763) target = $region52
        $region51: #{tpu_custom_call.1} parent=39 // pred_region
          %s766 = smul.u32 4, %s23
          %s768 = ssub.s32 1024, 1024
          %769 = vsyncadd %s759, %s768
          %s770 = smul.addr %s766, 2
          %s771 = smul.addr %s770, 128
          %s772 = scalar_lea.hbm %s5, %s771
          %s773 = sshll.u32 %s762, 4
          %s774 = int_to_ptr.vmem [resolvable:$true] %s773
          %779 = dma.vmem_to_hbm [thread:$0]  %s774, 1024, %s772, %s759, 256, 256, 16
        $region52: #{tpu_custom_call.1} parent=39 // pred_fallthru
          _
      $region40: #{tpu_custom_call.1} parent=5 // pred_fallthru
        _
      %p780 = scmp.le.s32.totalorder 2, %s18
      // Predicated region
      $region53: #{tpu_custom_call.1} parent=5 // pred_check
        %p781 = pneg %p780
      $region54: #{tpu_custom_call.1} parent=5 // pred_check_branch
        %783 = sbr.rel (%p781) target = $region56
      $region55: #{tpu_custom_call.1} parent=5 // pred_region
        %s784 = ssub.s32 %s18, 2
        // Predicated region
        $region57: #{tpu_custom_call.1} parent=55 // pred_check
          %p785 = pneg %p162
        $region58: #{tpu_custom_call.1} parent=55 // pred_check_branch
          %787 = sbr.rel (%p785) target = $region60
        $region59: #{tpu_custom_call.1} parent=55 // pred_region
          %s788 = sand.u32 %s147, 1
          %s789 = scalar_lea.sflag [#allocation4], %s788
          %s790 = sand.u32 %s147, 1
          %s791 = smul.addr %s790, 64
          %s792 = scalar_lea.vmem [#allocation7], %s791
          %793 = dma.done %s789, 1024
        $region60: #{tpu_custom_call.1} parent=55 // pred_fallthru
          _
      $region56: #{tpu_custom_call.1} parent=5 // pred_fallthru
        _
    $region6: #{tpu_custom_call.1} parent=1 // loop_footer
      %s22 = sadd.s32 1, %s18
    $region7: #{tpu_custom_call.1} parent=1 // loop_footer_branch
      %17 = sbr.rel target = $region3
    $region8: #{tpu_custom_call.1} parent=1 // loop_exit
      _
    %794 = vsyncpa [#allocation3], 1
    %s795 = scalar_lea.sflag [#allocation3], 1
    %796 = vsyncpa %s795, 1
    %797 = vsyncpa [#allocation6], 1
    %798 = vsyncpa [#allocation4], 1
    %s799 = scalar_lea.sflag [#allocation4], 1
    %800 = vsyncpa %s799, 1

</llo_original>
